<compile_context>
chip_gen: v5e
topology: v5e:2x2
jax: 0.10.0
libtpu: 0.0.40
codegen_flags: <defaults>
</compile_context>

<pallas_src>
import jax
import jax.numpy as jnp
import numpy as np
from jax.experimental import pallas as pl
from jax.experimental.pallas import tpu as pltpu


# -----------------------------------------------------------------------------
# In-kernel helpers
# -----------------------------------------------------------------------------
def _masked_softmax_write(scores, mask_ref, out_ref):
    """scores: (Bt, S) f32.  mask_ref / out_ref: (Bt, 1, S).

    Lane-axis softmax with -inf masking (masked_fill_ + softmax(dim=1) semantics).
    """
    s = scores[:, None, :]                                    # (Bt, 1, S)
    s = jnp.where(mask_ref[...] > 0, -jnp.inf, s)
    m = jnp.max(s, axis=-1, keepdims=True)                    # (Bt, 1, 1) XLU reduce
    e = jnp.exp(s - m)                                        # EUP
    denom = jnp.sum(e, axis=-1, keepdims=True)                # (Bt, 1, 1)
    inv = pl.reciprocal(denom, approx=True)                   # EUP slot, ~free
    out_ref[...] = (e * inv).astype(out_ref.dtype)


# -----------------------------------------------------------------------------
# Kernels (Bt batch elements per grid step)
# -----------------------------------------------------------------------------
def _no_query_kernel(eo_ref, w_ref, b_ref, mask_ref, out_ref):
    eo = eo_ref[...].astype(jnp.float32)                      # (Bt, S, D2)
    w = w_ref[...].astype(jnp.float32)                        # (1, D2)
    scores = jnp.sum(eo * w, axis=-1) + b_ref[...]            # (Bt, S)
    _masked_softmax_write(scores, mask_ref, out_ref)


def _dot_kernel(eo_ref, h_ref, mask_ref, out_ref):
    eo = eo_ref[...].astype(jnp.float32)                      # (Bt, S, D2)
    h = h_ref[...].astype(jnp.float32)                        # (Bt, 1, D2)
    scores = jnp.sum(eo * h, axis=-1)                         # (Bt, S) lane-reduce
    _masked_softmax_write(scores, mask_ref, out_ref)


def _general_kernel(eo_ref, h_ref, wT_ref, b_ref, mask_ref, out_ref):
    bt, s, d2 = eo_ref.shape
    eo2 = eo_ref[...].reshape(bt * s, d2)                     # batch fused into M
    energy = jnp.tanh(
        jnp.dot(eo2, wT_ref[...], preferred_element_type=jnp.float32)
        + b_ref[...])                                         # (Bt*S, D2) f32
    energy = energy.reshape(bt, s, d2)
    h = h_ref[...].astype(jnp.float32)                        # (Bt, 1, D2)
    scores = jnp.sum(energy * h, axis=-1)                     # (Bt, S)
    _masked_softmax_write(scores, mask_ref, out_ref)


def _concat_kernel(eo_ref, h_ref, w1T_ref, w2T_ref, b_ref, v_ref, vb_ref,
                   mask_ref, out_ref):
    bt, s, d2 = eo_ref.shape
    # cat([hidden_expand, eo]) @ W^T == hidden_row @ W[:, :2H]^T + eo @ W[:, 2H:]^T
    eo2 = eo_ref[...].reshape(bt * s, d2)                     # batch fused into M
    part_e = jnp.dot(eo2, w2T_ref[...],
                     preferred_element_type=jnp.float32).reshape(bt, s, d2)
    h2 = h_ref[...].reshape(bt, d2)                           # (Bt, D2)
    part_h = jnp.dot(h2.astype(w1T_ref.dtype), w1T_ref[...],
                     preferred_element_type=jnp.float32)      # (Bt, D2)
    energy = jnp.tanh(part_e + part_h[:, None, :] + b_ref[...])   # (Bt, S, D2)
    v = v_ref[...].astype(jnp.float32)                        # (1, D2)
    scores = jnp.sum(energy * v, axis=-1) + vb_ref[...]       # (Bt, S)
    _masked_softmax_write(scores, mask_ref, out_ref)


# -----------------------------------------------------------------------------
# Tiling helper
# -----------------------------------------------------------------------------
def _pick_batch_tile(B, S, D2, itemsize, vmem_budget=2 << 20):
    """Largest divisor of B whose per-step encoder_output tile stays under the
    VMEM budget (the pipeline double-buffers it), so large B*S*D2 does not blow
    v7x's 64 MiB VMEM while small problems still run in one/few grid steps."""
    best = 1
    for bt in range(1, B + 1):
        if B % bt == 0 and bt * S * D2 * itemsize <= vmem_budget:
            best = bt
    return best


# -----------------------------------------------------------------------------
# Module
# -----------------------------------------------------------------------------
class AttentionPallas:
    def __init__(self, method, hidden_size, key):
        self.method = method
        self.hidden_size = hidden_size
        d2 = hidden_size * 2

        def linear_init(k, out_f, in_f):
            k1, k2 = jax.random.split(k)
            bound = 1.0 / (in_f ** 0.5)
            w = jax.random.uniform(k1, (out_f, in_f), jnp.float32, -bound, bound)
            b = jax.random.uniform(k2, (out_f,), jnp.float32, -bound, bound)
            return w, b

        if method == 'no_query':
            self.W, self.b = linear_init(key, 1, d2)
        elif method == 'general':
            self.W, self.b = linear_init(key, d2, d2)
        elif method == 'concat':
            k1, k2 = jax.random.split(key)
            self.W, self.b = linear_init(k1, d2, 2 * d2)
            self.v_w, self.v_b = linear_init(k2, 1, d2)
        # 'dot' has no parameters

    def __call__(self, encoder_output, hidden, attn_mask=None):
        B, S, D2 = encoder_output.shape
        eo = encoder_output                              # native dtype (bf16 ok)
        hrow = jnp.transpose(hidden, (0, 2, 1))          # (B, 1, D2) lane-dense
        if attn_mask is None:
            mask3 = jnp.zeros((B, 1, S), jnp.int32)
        else:
            mask3 = attn_mask.astype(jnp.int32).reshape(B, 1, S)

        bt = _pick_batch_tile(B, S, D2, jnp.dtype(eo.dtype).itemsize)
        grid = (B // bt,)

        def batch_spec(shape):
            rest = len(shape) - 1
            return pl.BlockSpec((bt,) + tuple(shape[1:]),
                                lambda i, _r=rest: (i,) + (0,) * _r)

        def param_spec(shape):
            nd = len(shape)
            return pl.BlockSpec(tuple(shape), lambda i, _n=nd: (0,) * _n)

        out_shape = jax.ShapeDtypeStruct((B, 1, S), jnp.float32)
        out_spec = batch_spec((B, 1, S))
        cparams = pltpu.CompilerParams(dimension_semantics=("parallel",))

        if self.method == 'no_query':
            b2 = self.b.reshape(1, 1)
            operands = (eo, self.W, b2, mask3)
            specs = [batch_spec(eo.shape), param_spec(self.W.shape),
                     param_spec(b2.shape), batch_spec(mask3.shape)]
            kernel = _no_query_kernel
        elif self.method == 'dot':
            operands = (eo, hrow, mask3)
            specs = [batch_spec(eo.shape), batch_spec(hrow.shape),
                     batch_spec(mask3.shape)]
            kernel = _dot_kernel
        elif self.method == 'general':
            wT = self.W.T.astype(eo.dtype)               # (D2, D2), MXU dtype = eo
            b_row = self.b.reshape(1, -1)                # (1, D2) f32
            operands = (eo, hrow, wT, b_row, mask3)
            specs = [batch_spec(eo.shape), batch_spec(hrow.shape),
                     param_spec(wT.shape), param_spec(b_row.shape),
                     batch_spec(mask3.shape)]
            kernel = _general_kernel
        elif self.method == 'concat':
            wT = self.W.T.astype(eo.dtype)               # (2*D2, D2)
            w1T, w2T = wT[:D2], wT[D2:]                  # hidden part / encoder part
            b_row = self.b.reshape(1, -1)                # (1, D2) f32
            vb2 = self.v_b.reshape(1, 1)
            operands = (eo, hrow, w1T, w2T, b_row, self.v_w, vb2, mask3)
            specs = [batch_spec(eo.shape), batch_spec(hrow.shape),
                     param_spec(w1T.shape), param_spec(w2T.shape),
                     param_spec(b_row.shape), param_spec(self.v_w.shape),
                     param_spec(vb2.shape), batch_spec(mask3.shape)]
            kernel = _concat_kernel
        else:
            raise ValueError(f"unknown method {self.method}")

        out3 = pl.pallas_call(
            kernel,
            out_shape=out_shape,
            grid=grid,
            in_specs=specs,
            out_specs=out_spec,
            compiler_params=cparams,
        )(*operands)
        return out3[:, 0, :]                             # (B, S)

    # Pure-JAX reference (mirrors the PyTorch forward) for correctness checking.
    def reference(self, encoder_output, hidden, attn_mask=None):
        eo = encoder_output.astype(jnp.float32)
        h = hidden.astype(jnp.float32)
        B, S, D2 = eo.shape
        if self.method == 'no_query':
            scores = (eo @ self.W.T + self.b)[..., 0]
        elif self.method == 'dot':
            scores = jnp.einsum('bsd,bdo->bso', eo, h)[..., 0]
        elif self.method == 'general':
            energy = jnp.tanh(eo @ self.W.T + self.b)
            scores = jnp.einsum('bsd,bdo->bso', energy, h)[..., 0]
        elif self.method == 'concat':
            h_exp = jnp.broadcast_to(jnp.transpose(h, (0, 2, 1)), (B, S, D2))
            cat = jnp.concatenate([h_exp, eo], axis=2)
            energy = jnp.tanh(cat @ self.W.T + self.b)
            scores = (energy @ self.v_w.T + self.v_b)[..., 0]
        if attn_mask is not None:
            scores = jnp.where(attn_mask, -jnp.inf, scores)
        return jax.nn.softmax(scores, axis=1)


# -----------------------------------------------------------------------------
if __name__ == "__main__":
    key = jax.random.PRNGKey(0)
    B, S, H = 2, 8, 16
    D2 = 2 * H

    k_eo, k_h, k_p = jax.random.split(key, 3)
    encoder_output = jax.random.normal(k_eo, (B, S, D2), jnp.float32)
    hidden = jax.random.normal(k_h, (B, D2, 1), jnp.float32)
    # mask the last two sequence positions in every batch
    attn_mask = jnp.zeros((B, S), dtype=bool).at[:, -2:].set(True)

    for idx, method in enumerate(['no_query', 'dot', 'general', 'concat']):
        attn = AttentionPallas(method, H, jax.random.fold_in(k_p, idx))
        for mask in (None, attn_mask):
            out = attn(encoder_output, hidden, mask)
            jax.block_until_ready(out)
            ref = attn.reference(encoder_output, hidden, mask)
            assert out.shape == (B, S)
            # tolerance accounts for the approx (EUP) softmax reciprocal
            np.testing.assert_allclose(np.asarray(out), np.asarray(ref),
                                       rtol=1e-2, atol=1e-3)

    # bf16 smoke test: inputs stay bf16 on the HBM path, accumulation is f32.
    attn_bf = AttentionPallas('general', H, k_p)
    out_bf = attn_bf(encoder_output.astype(jnp.bfloat16),
                     hidden.astype(jnp.bfloat16), None)
    jax.block_until_ready(out_bf)
    assert out_bf.shape == (B, S)
    assert np.all(np.isfinite(np.asarray(out_bf)))
    assert np.allclose(np.asarray(out_bf).sum(axis=-1), 1.0, atol=2e-2)

    print("KERNEL_OK")
</pallas_src>

<mosaic_0001>
module attributes {stable_mosaic.version = 11 : i64} {
  func.func @_no_query_kernel(%arg0: i32, %arg1: memref<2x8x32xf32, #tpu.memory_space<vmem>>, %arg2: memref<1x32xf32, #tpu.memory_space<vmem>>, %arg3: memref<1x1xf32, #tpu.memory_space<vmem>>, %arg4: memref<2x1x8xi32, #tpu.memory_space<vmem>>, %arg5: memref<2x1x8xf32, #tpu.memory_space<vmem>>) attributes {dimension_semantics = [#tpu.dimension_semantics<parallel>], iteration_bounds = array<i64: 1>, scalar_prefetch = 0 : i64, scratch_operands = 0 : i64, tpu.core_type = #tpu.core_type<tc>, window_params = [{transform_indices = @transform_0, window_bounds = array<i64: 2, 8, 32>}, {pipeline_mode = #tpu.pipeline_mode<synchronous>, transform_indices = @transform_1, window_bounds = array<i64: 1, 32>}, {pipeline_mode = #tpu.pipeline_mode<synchronous>, transform_indices = @transform_2, window_bounds = array<i64: 1, 1>}, {transform_indices = @transform_3, window_bounds = array<i64: 2, 1, 8>}, {transform_indices = @transform_4, window_bounds = array<i64: 2, 1, 8>}]} {
    %c0 = arith.constant 0 : index
    %c0_0 = arith.constant 0 : index
    %c0_1 = arith.constant 0 : index
    %0 = vector.load %arg1[%c0, %c0_0, %c0_1] : memref<2x8x32xf32, #tpu.memory_space<vmem>>, vector<2x8x32xf32>
    %c0_2 = arith.constant 0 : index
    %c0_3 = arith.constant 0 : index
    %1 = vector.load %arg2[%c0_2, %c0_3] : memref<1x32xf32, #tpu.memory_space<vmem>>, vector<1x32xf32>
    %2 = vector.shape_cast %1 : vector<1x32xf32> to vector<1x1x32xf32>
    %3 = vector.broadcast %2 : vector<1x1x32xf32> to vector<2x8x32xf32>
    %4 = arith.mulf %0, %3 : vector<2x8x32xf32>
    %cst = arith.constant dense<0.000000e+00> : vector<2x8xf32>
    %5 = vector.multi_reduction <add>, %4, %cst [2] : vector<2x8x32xf32> to vector<2x8xf32>
    %c0_4 = arith.constant 0 : index
    %c0_5 = arith.constant 0 : index
    %6 = vector.load %arg3[%c0_4, %c0_5] : memref<1x1xf32, #tpu.memory_space<vmem>>, vector<1x1xf32>
    %7 = vector.broadcast %6 : vector<1x1xf32> to vector<2x8xf32>
    %8 = arith.addf %5, %7 : vector<2x8xf32>
    %9 = vector.shape_cast %8 : vector<2x8xf32> to vector<2x1x8xf32>
    %c0_6 = arith.constant 0 : index
    %c0_7 = arith.constant 0 : index
    %c0_8 = arith.constant 0 : index
    %10 = vector.load %arg4[%c0_6, %c0_7, %c0_8] : memref<2x1x8xi32, #tpu.memory_space<vmem>>, vector<2x1x8xi32>
    %c0_i32 = arith.constant 0 : i32
    %11 = vector.broadcast %c0_i32 : i32 to vector<2x1x8xi32>
    %12 = arith.cmpi sgt, %10, %11 : vector<2x1x8xi32>
    %cst_9 = arith.constant 0xFF800000 : f32
    %13 = vector.broadcast %cst_9 : f32 to vector<2x1x8xf32>
    %14 = arith.select %12, %13, %9 : vector<2x1x8xi1>, vector<2x1x8xf32>
    %cst_10 = arith.constant dense<0xFF800000> : vector<2x1xf32>
    %15 = vector.multi_reduction <maximumf>, %14, %cst_10 [2] : vector<2x1x8xf32> to vector<2x1xf32>
    %16 = vector.shape_cast %15 : vector<2x1xf32> to vector<2x1x1xf32>
    %17 = vector.broadcast %16 : vector<2x1x1xf32> to vector<2x1x8xf32>
    %18 = arith.subf %14, %17 : vector<2x1x8xf32>
    %19 = math.exp %18 : vector<2x1x8xf32>
    %cst_11 = arith.constant dense<0.000000e+00> : vector<2x1xf32>
    %20 = vector.multi_reduction <add>, %19, %cst_11 [2] : vector<2x1x8xf32> to vector<2x1xf32>
    %21 = vector.shape_cast %20 : vector<2x1xf32> to vector<2x1x1xf32>
    %22 = tpu.reciprocal %21 {approx = true} : vector<2x1x1xf32> -> vector<2x1x1xf32>
    %23 = vector.broadcast %22 : vector<2x1x1xf32> to vector<2x1x8xf32>
    %24 = arith.mulf %19, %23 : vector<2x1x8xf32>
    %c0_12 = arith.constant 0 : index
    %c0_13 = arith.constant 0 : index
    %c0_14 = arith.constant 0 : index
    %25 = vector.load %arg5[%c0_12, %c0_13, %c0_14] : memref<2x1x8xf32, #tpu.memory_space<vmem>>, vector<2x1x8xf32>
    tpu.vector_store %arg5[%c0_12, %c0_13, %c0_14], %24 {strides = array<i32>} : memref<2x1x8xf32, #tpu.memory_space<vmem>>, vector<2x1x8xf32>,
    return
  }
  func.func @transform_0(%arg0: i32) -> (i32, i32, i32) {
    %c0_i32 = arith.constant 0 : i32
    %c0_i32_0 = arith.constant 0 : i32
    %c0_i32_1 = arith.constant 0 : i32
    return %arg0, %c0_i32, %c0_i32_0 : i32, i32, i32
  }
  func.func @transform_1(%arg0: i32) -> (i32, i32) {
    %c0_i32 = arith.constant 0 : i32
    %c0_i32_0 = arith.constant 0 : i32
    %c0_i32_1 = arith.constant 0 : i32
    return %c0_i32, %c0_i32_0 : i32, i32
  }
  func.func @transform_2(%arg0: i32) -> (i32, i32) {
    %c0_i32 = arith.constant 0 : i32
    %c0_i32_0 = arith.constant 0 : i32
    %c0_i32_1 = arith.constant 0 : i32
    return %c0_i32, %c0_i32_0 : i32, i32
  }
  func.func @transform_3(%arg0: i32) -> (i32, i32, i32) {
    %c0_i32 = arith.constant 0 : i32
    %c0_i32_0 = arith.constant 0 : i32
    %c0_i32_1 = arith.constant 0 : i32
    return %arg0, %c0_i32, %c0_i32_0 : i32, i32, i32
  }
  func.func @transform_4(%arg0: i32) -> (i32, i32, i32) {
    %c0_i32 = arith.constant 0 : i32
    %c0_i32_0 = arith.constant 0 : i32
    %c0_i32_1 = arith.constant 0 : i32
    return %arg0, %c0_i32, %c0_i32_0 : i32, i32, i32
  }
}

</mosaic_0001>

<llo_original>
// kernel: tpu_custom_call.1
$region0: #{tpu_custom_call.1}
  #allocation0 [shape = 'u32[]', space=smem, size = 0x4, offset = 0x4, fixed_abs, tag = 'smem constant byte address 0x4 - core index']
  #allocation1 [shape = 'u32[72,128]{1,0:T(1,128)}', space=vmem, size = 0x9000, scoped, tag = 'internal scratch']
  #allocation2 [shape = 'f32[1,1]{1,0:T(1,128)S(1)}', space=vmem, size = 0x200, scoped, tag = 'scoped memory for tpu_custom_call.1']
  %s0 = inlined_call_operand.hbm [shape: f32[2,8,32], index: 0, kind: input, shape index: {}]
  %s1 = inlined_call_operand.vmem [shape: f32[1,32], index: 1, kind: input, shape index: {}]
  %s2 = inlined_call_operand.<no memory space> [shape: f32[1,1], index: 2, kind: input, shape index: {}]
  %s3 = inlined_call_operand.vmem [shape: s32[2,1,8], index: 3, kind: input, shape index: {}]
  %s4 = inlined_call_operand.hbm [shape: f32[2,1,8], index: 4, kind: output, shape index: {}]
  %s5 = sld [smem:[#allocation0]]
  $region30: #{tpu_custom_call.1} parent=0
    _
  %s7 = ssub.s32 1, %s5
  %s8 = scalar_select 0, %s7, %s5
  %v9 = vstv %s2
  %10 = vst [vmem:[#allocation2] sm:$0x1] %v9
  $region1: #{tpu_custom_call.1} parent=0
    #allocation3 [shape = 'u8[8192]{0}', space=vmem, size = 0x2000, scoped, tag = 'input window, operand 0, single buffered']
    #allocation4 [shape = 's32[1]{0}', space=sflag, size = 0x4, scoped, tag = 'scoped memory for tpu_custom_call.1']
    #allocation5 [shape = 's32[1]{0}', space=sflag, size = 0x4, scoped, tag = 'scoped memory for tpu_custom_call.1']
    #allocation6 [shape = 'u8[1024]{0}', space=vmem, size = 0x400, scoped, tag = 'output window, operand 0, single buffered']
    %11 = vsyncpa [#allocation4], 0
    %12 = vsyncpa [#allocation5], 0
    // Predicated region
    $region2: #{tpu_custom_call.1} parent=1 // pred_check
      _
    $region3: #{tpu_custom_call.1} parent=1 // pred_check_branch
      %14 = sbr.rel (0) target = $region5
    $region4: #{tpu_custom_call.1} parent=1 // pred_region
      %16 = vsyncadd [#allocation4], 0
      %s17 = sshll.u32 %s0, 4
      %s18 = int_to_ptr.hbm [resolvable:$true] %s17
      %s19 = sshll.u32 [#allocation3], 4
      %s20 = int_to_ptr.vmem [resolvable:$true] %s19
      %25 = dma.hbm_to_vmem [thread:$0]  %s18, 256, %s20, [#allocation4], 128, 128, 8
    $region5: #{tpu_custom_call.1} parent=1 // pred_fallthru
      _
    // Predicated region
    $region6: #{tpu_custom_call.1} parent=1 // pred_check
      _
    $region7: #{tpu_custom_call.1} parent=1 // pred_check_branch
      %27 = sbr.rel (0) target = $region9
    $region8: #{tpu_custom_call.1} parent=1 // pred_region
      _
    $region9: #{tpu_custom_call.1} parent=1 // pred_fallthru
      _
    // Predicated region
    $region10: #{tpu_custom_call.1} parent=1 // pred_check
      _
    $region11: #{tpu_custom_call.1} parent=1 // pred_check_branch
      %29 = sbr.rel (0) target = $region13
    $region12: #{tpu_custom_call.1} parent=1 // pred_region
      _
    $region13: #{tpu_custom_call.1} parent=1 // pred_fallthru
      _
    // Predicated region
    $region14: #{tpu_custom_call.1} parent=1 // pred_check
      _
    $region15: #{tpu_custom_call.1} parent=1 // pred_check_branch
      %31 = sbr.rel (0) target = $region17
    $region16: #{tpu_custom_call.1} parent=1 // pred_region
      _
    $region17: #{tpu_custom_call.1} parent=1 // pred_fallthru
      _
    // Predicated region
    $region18: #{tpu_custom_call.1} parent=1 // pred_check
      _
    $region19: #{tpu_custom_call.1} parent=1 // pred_check_branch
      %33 = sbr.rel (0) target = $region21
    $region20: #{tpu_custom_call.1} parent=1 // pred_region
      %35 = dma.done [#allocation4], 256
    $region21: #{tpu_custom_call.1} parent=1 // pred_fallthru
      _
    %v36 = vld [vmem:[#allocation3] sm:$0xff]
    %v37 = vld [vmem:[#allocation3 + $0x8] sm:$0xff]
    %v38 = vld [vmem:[%s1] sm:$0x1]
    %v40 = vperm.slane %v38, 0
    %v42 = vmul.f32 %v36, %v40
    %v43 = vmul.f32 %v37, %v40
    %vm44 = vcmask 261120
    %v45 = vsel %vm44, %v42, 0.0
    %46 = vadd.xlane.f32.xlu0 %v45
    %v47 = vpop.xlane.xlu0 %46
    %v48 = vsel %vm44, %v43, 0.0
    %49 = vadd.xlane.f32.xlu0 %v48
    %v50 = vpop.xlane.xlu0 %49
    %v51 = vld [vmem:[#allocation2] sm:$0x1]
    %v53 = vperm.slane %v51, 0
    %54 = vset.pattern.permute.xlu0 0
    %55 = vperm.xlu0 %54, %v53
    %v56 = vpop.permute.xlu0 %55
    %v58 = vadd.f32 %v47, %v56
    %v59 = vadd.f32 %v50, %v56
    %v60 = vld [vmem:[%s3] sm:$0x1]
    %v61 = vld [vmem:[%s3 + $0x1] sm:$0x1]
    %vm62 = vcmp.gt.s32.totalorder %v60, 0
    %vm63 = vcmp.gt.s32.totalorder %v61, 0
    %v66 = vperm.slane %v58, 0
    %v67 = vperm.slane %v58, 1
    %v68 = vperm.slane %v58, 2
    %v69 = vperm.slane %v58, 3
    %v70 = vperm.slane %v58, 4
    %v71 = vperm.slane %v58, 5
    %v72 = vperm.slane %v58, 6
    %v73 = vperm.slane %v58, 7
    %v74 = vperm.slane %v59, 0
    %v75 = vperm.slane %v59, 1
    %v76 = vperm.slane %v59, 2
    %v77 = vperm.slane %v59, 3
    %v78 = vperm.slane %v59, 4
    %v79 = vperm.slane %v59, 5
    %v80 = vperm.slane %v59, 6
    %v81 = vperm.slane %v59, 7
    %82 = vst [vmem:[#allocation1] ss:$9 sm:$0xff] %v66
    %s83 = scalar_lea.vmem [#allocation1], 1
    %84 = vst [vmem:[%s83] ss:$9 sm:$0xff] %v67
    %s85 = scalar_lea.vmem [#allocation1], 2
    %86 = vst [vmem:[%s85] ss:$9 sm:$0xff] %v68
    %s87 = scalar_lea.vmem [#allocation1], 3
    %88 = vst [vmem:[%s87] ss:$9 sm:$0xff] %v69
    %s89 = scalar_lea.vmem [#allocation1], 4
    %90 = vst [vmem:[%s89] ss:$9 sm:$0xff] %v70
    %s91 = scalar_lea.vmem [#allocation1], 5
    %92 = vst [vmem:[%s91] ss:$9 sm:$0xff] %v71
    %s93 = scalar_lea.vmem [#allocation1], 6
    %94 = vst [vmem:[%s93] ss:$9 sm:$0xff] %v72
    %s95 = scalar_lea.vmem [#allocation1], 7
    %96 = vst [vmem:[%s95] ss:$9 sm:$0xff] %v73
    %v97 = vld [vmem:[#allocation1] sm:$0xff]
    %98 = vst [vmem:[#allocation1] ss:$9 sm:$0xff] %v74
    %99 = vst [vmem:[%s83] ss:$9 sm:$0xff] %v75
    %100 = vst [vmem:[%s85] ss:$9 sm:$0xff] %v76
    %101 = vst [vmem:[%s87] ss:$9 sm:$0xff] %v77
    %102 = vst [vmem:[%s89] ss:$9 sm:$0xff] %v78
    %103 = vst [vmem:[%s91] ss:$9 sm:$0xff] %v79
    %104 = vst [vmem:[%s93] ss:$9 sm:$0xff] %v80
    %105 = vst [vmem:[%s95] ss:$9 sm:$0xff] %v81
    %v106 = vld [vmem:[#allocation1] sm:$0xff]
    %107 = vset.pattern.permute.xlu0 0
    %108 = vperm.xlu0 %107, %v97
    %v109 = vpop.permute.xlu0 %108
    %110 = vset.pattern.permute.xlu0 0
    %111 = vperm.xlu0 %110, %v106
    %v112 = vpop.permute.xlu0 %111
    %v113 = vlaneseq
    %v114 = vand.u32 %v113, 127
    %v115 = vperm.slane %v109, %v114
    %v116 = vperm.slane %v112, %v114
    %v119 = vsel %vm62, -inf, %v115
    %v120 = vsel %vm63, -inf, %v116
    %vm121 = vcmask 57344
    %v122 = vsel %vm121, %v119, -inf
    %123 = vmax.xlane.f32.xlu0 %v122
    %v124 = vpop.xlane.xlu0 %123
    %v125 = vsel %vm121, %v120, -inf
    %126 = vmax.xlane.f32.xlu0 %v125
    %v127 = vpop.xlane.xlu0 %126
    %v128 = vsub.f32 %v119, %v124
    %v129 = vsub.f32 %v120, %v127
    %v130 = vmul.f32 %v128, 1.442695
    %v131 = vpow.pop %v130
    %v132 = vmul.f32 %v129, 1.442695
    %v133 = vpow.pop %v132
    %v134 = vsel %vm121, %v131, 0.0
    %135 = vadd.xlane.f32.xlu0 %v134
    %v136 = vpop.xlane.xlu0 %135
    %v137 = vsel %vm121, %v133, 0.0
    %138 = vadd.xlane.f32.xlu0 %v137
    %v139 = vpop.xlane.xlu0 %138
    %v140 = vrcp.pop %v136
    %v141 = vrcp.pop %v139
    %v142 = vmul.f32 %v131, %v140
    %v143 = vmul.f32 %v133, %v141
    %144 = vst.msk [vmem:[#allocation6] sm:$0x1] %vm121, %v142
    %145 = vst.msk [vmem:[#allocation6 + $0x1] sm:$0x1] %vm121, %v143
    // Predicated region
    $region22: #{tpu_custom_call.1} parent=1 // pred_check
      _
    $region23: #{tpu_custom_call.1} parent=1 // pred_check_branch
      %147 = sbr.rel (0) target = $region25
    $region24: #{tpu_custom_call.1} parent=1 // pred_region
      %149 = vsyncadd [#allocation5], 0
      %s150 = sshll.u32 [#allocation6], 4
      %s151 = int_to_ptr.vmem [resolvable:$true] %s150
      %s152 = sshll.u32 %s4, 4
      %s153 = int_to_ptr.hbm [resolvable:$true] %s152
      %158 = dma.vmem_to_hbm [thread:$0]  %s151, 32, %s153, [#allocation5], 16, 16, 1
    $region25: #{tpu_custom_call.1} parent=1 // pred_fallthru
      _
    // Predicated region
    $region26: #{tpu_custom_call.1} parent=1 // pred_check
      _
    $region27: #{tpu_custom_call.1} parent=1 // pred_check_branch
      %160 = sbr.rel (0) target = $region29
    $region28: #{tpu_custom_call.1} parent=1 // pred_region
      %162 = dma.done [#allocation5], 32
    $region29: #{tpu_custom_call.1} parent=1 // pred_fallthru
      _
    %163 = vsyncpa [#allocation4], 1
    %164 = vsyncpa [#allocation5], 1

</llo_original>
